<compile_context>
chip_gen: v7x
topology: tpu7x:2x2x1
jax: 0.10.0
libtpu: 0.0.40
codegen_flags: <defaults>
</compile_context>

<pallas_src>
import functools
import math

import jax
import jax.numpy as jnp
from jax.experimental import pallas as pl
from jax.experimental.pallas import tpu as pltpu


def _antisym_kernel(has_bias, x_ref, m_ref, *rest):
    """out_tile = x_tile @ M (+ bias), f32 accumulation on the MXU."""
    if has_bias:
        b_ref, o_ref = rest
    else:
        (o_ref,) = rest
    acc = jnp.dot(x_ref[...], m_ref[...], preferred_element_type=jnp.float32)
    if has_bias:
        acc = acc + b_ref[...]          # bias is f32, broadcast over batch rows
    o_ref[...] = acc.astype(o_ref.dtype)


def _round_up(n, m):
    return ((n + m - 1) // m) * m


def _vmem_budget_bytes():
    """~75% of physical VMEM (headroom for compiler scratch / semaphores)."""
    cap = 64 << 20  # conservative fallback == v7x per-TC capacity
    try:
        info = pltpu.get_tpu_info()
        cap = int(getattr(info, "vmem_capacity_bytes", cap) or cap)
    except Exception:
        pass
    return min(int(cap * 3 // 4), 100 << 20)


def _resident_spec(block_shape):
    """Grid-invariant operand: constant index_map, single-buffered."""
    idx = lambda i: (0,) * len(block_shape)
    try:
        return pl.BlockSpec(block_shape, idx, pipeline_mode=pl.Buffered(1))
    except TypeError:  # very old jax without pipeline_mode on BlockSpec
        return pl.BlockSpec(block_shape, idx)


def antisym_layer(x, weight, gamma, bias=None, *, use_bf16=False):
    """Pallas wrapper.

    x:      (B, F)
    weight: (F, F)
    gamma:  python float or scalar
    bias:   (F,) or None
    """
    B, F = x.shape
    assert weight.shape == (F, F)
    out_dtype = x.dtype
    has_bias = bias is not None

    # ---- wrapper-side prep: build M once (free vs the O(B*F^2) matmul) ----
    gamma = jnp.asarray(gamma, dtype=jnp.float32)
    w32 = weight.astype(jnp.float32)
    m = 0.5 * (w32 - w32.T) - (0.5 * gamma) * jnp.eye(F, dtype=jnp.float32)

    # Lane-dense feature width (multiple of 128) -> unmasked vst, full MXU
    # columns.  Skip for small F where the extra HBM bytes would dominate.
    f_pad = F
    if F % 128 != 0 and F >= 96:
        f_pad = _round_up(F, 128)

    stream_dtype = jnp.bfloat16 if use_bf16 else jnp.float32
    m = m.astype(stream_dtype)
    if f_pad != F:
        m = jnp.pad(m, ((0, f_pad - F), (0, f_pad - F)))

    if has_bias:
        b = bias.astype(jnp.float32).reshape(1, F)   # keep bias f32 end-to-end
        if f_pad != F:
            b = jnp.pad(b, ((0, 0), (0, f_pad - F)))

    # ---- VMEM-driven batch tile size ----
    itemsize = jnp.dtype(stream_dtype).itemsize
    out_itemsize = jnp.dtype(out_dtype).itemsize
    m_bytes = f_pad * f_pad * itemsize               # single-buffered (Buffered(1))
    slack = 2 << 20
    vmem_budget = _vmem_budget_bytes()
    stream_bytes_per_row = 2 * f_pad * (itemsize + out_itemsize)  # 2-buf x + out
    avail = vmem_budget - m_bytes - slack
    if avail < stream_bytes_per_row * 8:
        # TODO(synk): K/N-tile M with an f32 VMEM accumulator for very large F.
        raise ValueError(
            f"features={F} too large for VMEM-resident M on this TPU "
            f"(M needs {m_bytes} B of a {vmem_budget} B budget)")
    tb = max(8, min(2048, (avail // stream_bytes_per_row) // 8 * 8))

    b8 = _round_up(B, 8)
    tb = min(tb, b8)
    # >= 2 grid steps whenever the batch allows, so v7x's 2nd TensorCore
    # gets work under dimension_semantics=("parallel",).
    if tb >= b8 and b8 >= 16:
        tb = _round_up(pl.cdiv(b8, 2), 8)
    b_pad = _round_up(b8, tb)

    x_in = x.astype(stream_dtype)
    if b_pad != B or f_pad != F:
        x_in = jnp.pad(x_in, ((0, b_pad - B), (0, f_pad - F)))

    # ---- specs ----
    in_specs = [
        pl.BlockSpec((tb, f_pad), lambda i: (i, 0)),  # streamed x tile (pipelined)
        _resident_spec((f_pad, f_pad)),               # M: VMEM-resident, 1 buffer
    ]
    args = [x_in, m]
    if has_bias:
        in_specs.append(_resident_spec((1, f_pad)))   # bias: resident, 1 buffer
        args.append(b)

    kernel = functools.partial(_antisym_kernel, has_bias)

    grid = (b_pad // tb,)
    flops = 2 * b_pad * f_pad * f_pad                 # one matmul per row block
    bytes_accessed = (b_pad * f_pad * (itemsize + out_itemsize)
                      + f_pad * f_pad * itemsize
                      + (4 * f_pad if has_bias else 0))

    out = pl.pallas_call(
        kernel,
        out_shape=jax.ShapeDtypeStruct((b_pad, f_pad), out_dtype),
        grid=grid,
        in_specs=in_specs,
        out_specs=pl.BlockSpec((tb, f_pad), lambda i: (i, 0)),
        compiler_params=pltpu.CompilerParams(
            dimension_semantics=("parallel",),
            vmem_limit_bytes=int(vmem_budget),
        ),
        cost_estimate=pl.CostEstimate(
            flops=int(flops), transcendentals=0,
            bytes_accessed=int(bytes_accessed)),
    )(*args)

    if b_pad != B or f_pad != F:
        out = out[:B, :F]
    return out


if __name__ == "__main__":
    HI = jax.lax.Precision.HIGHEST
    key = jax.random.PRNGKey(0)
    kx, kw, kb, kx2, kw2, kb2, kx3 = jax.random.split(key, 7)
    gamma = 0.1

    # --- case 1: features=32 (no lane padding), both bias paths ---
    F1 = 32
    bound = 1.0 / math.sqrt(F1)
    w1 = jax.random.uniform(kw, (F1, F1), minval=-bound, maxval=bound,
                            dtype=jnp.float32)
    b1 = jax.random.uniform(kb, (F1,), minval=-bound, maxval=bound,
                            dtype=jnp.float32)
    m1 = 0.5 * (w1 - w1.T - gamma * jnp.eye(F1, dtype=jnp.float32))

    x1 = jax.random.normal(kx, (8, F1), dtype=jnp.float32)
    out_nb = jax.block_until_ready(antisym_layer(x1, w1, gamma))
    out_b = jax.block_until_ready(antisym_layer(x1, w1, gamma, bias=b1))
    ref_nb = jnp.matmul(x1, m1, precision=HI)
    assert jnp.allclose(out_nb, ref_nb, atol=1e-4, rtol=1e-4)
    assert jnp.allclose(out_b, ref_nb + b1[None, :], atol=1e-4, rtol=1e-4)

    # --- case 2: ragged batch (padding + slice + 2-step grid) ---
    x2 = jax.random.normal(kx2, (20, F1), dtype=jnp.float32)
    out2 = jax.block_until_ready(antisym_layer(x2, w1, gamma, bias=b1))
    ref2 = jnp.matmul(x2, m1, precision=HI) + b1[None, :]
    assert out2.shape == (20, F1)
    assert jnp.allclose(out2, ref2, atol=1e-4, rtol=1e-4)

    # --- case 3: features=160 (lane-padded to 256), batch split across 2 steps ---
    F2 = 160
    bound2 = 1.0 / math.sqrt(F2)
    w2 = jax.random.uniform(kw2, (F2, F2), minval=-bound2, maxval=bound2,
                            dtype=jnp.float32)
    b2 = jax.random.uniform(kb2, (F2,), minval=-bound2, maxval=bound2,
                            dtype=jnp.float32)
    m2 = 0.5 * (w2 - w2.T - gamma * jnp.eye(F2, dtype=jnp.float32))
    x3 = jax.random.normal(kx3, (16, F2), dtype=jnp.float32)
    out3 = jax.block_until_ready(antisym_layer(x3, w2, gamma, bias=b2))
    ref3 = jnp.matmul(x3, m2, precision=HI) + b2[None, :]
    assert out3.shape == (16, F2)
    assert jnp.allclose(out3, ref3, atol=1e-4, rtol=1e-4)

    # --- case 4: bf16 fast path (loose tolerance) ---
    out4 = jax.block_until_ready(
        antisym_layer(x3, w2, gamma, bias=b2, use_bf16=True))
    assert jnp.allclose(out4, ref3, atol=5e-2, rtol=5e-2)

    print("KERNEL_OK")
</pallas_src>

<mosaic_0001>
module attributes {stable_mosaic.version = 11 : i64} {
  func.func @_antisym_kernel(%arg0: i32, %arg1: memref<8x32xf32, #tpu.memory_space<vmem>>, %arg2: memref<32x32xf32, #tpu.memory_space<vmem>>, %arg3: memref<8x32xf32, #tpu.memory_space<vmem>>) attributes {dimension_semantics = [#tpu.dimension_semantics<parallel>], iteration_bounds = array<i64: 1>, scalar_prefetch = 0 : i64, scratch_operands = 0 : i64, tpu.core_type = #tpu.core_type<tc>, window_params = [{transform_indices = @transform_0, window_bounds = array<i64: 8, 32>}, {pipeline_mode = #tpu.pipeline_mode<synchronous>, transform_indices = @transform_1, window_bounds = array<i64: 32, 32>}, {transform_indices = @transform_2, window_bounds = array<i64: 8, 32>}]} {
    %c0 = arith.constant 0 : index
    %c0_0 = arith.constant 0 : index
    %0 = vector.load %arg1[%c0, %c0_0] : memref<8x32xf32, #tpu.memory_space<vmem>>, vector<8x32xf32>
    %c0_1 = arith.constant 0 : index
    %c0_2 = arith.constant 0 : index
    %1 = vector.load %arg2[%c0_1, %c0_2] : memref<32x32xf32, #tpu.memory_space<vmem>>, vector<32x32xf32>
    %cst = arith.constant dense<0.000000e+00> : vector<8x32xf32>
    %2 = tpu.matmul %0, %1, %cst {dimension_numbers = #tpu.dot_dimension_numbers<[1], [0], [0], [1], [0, 0, 1, 1], [], []>} : vector<8x32xf32>, vector<32x32xf32>, vector<8x32xf32> -> vector<8x32xf32>
    %c0_3 = arith.constant 0 : index
    %c0_4 = arith.constant 0 : index
    %3 = vector.load %arg3[%c0_3, %c0_4] : memref<8x32xf32, #tpu.memory_space<vmem>>, vector<8x32xf32>
    tpu.vector_store %arg3[%c0_3, %c0_4], %2 {strides = array<i32>} : memref<8x32xf32, #tpu.memory_space<vmem>>, vector<8x32xf32>,
    return
  }
  func.func @transform_0(%arg0: i32) -> (i32, i32) {
    %c0_i32 = arith.constant 0 : i32
    %c0_i32_0 = arith.constant 0 : i32
    return %arg0, %c0_i32 : i32, i32
  }
  func.func @transform_1(%arg0: i32) -> (i32, i32) {
    %c0_i32 = arith.constant 0 : i32
    %c0_i32_0 = arith.constant 0 : i32
    %c0_i32_1 = arith.constant 0 : i32
    return %c0_i32, %c0_i32_0 : i32, i32
  }
  func.func @transform_2(%arg0: i32) -> (i32, i32) {
    %c0_i32 = arith.constant 0 : i32
    %c0_i32_0 = arith.constant 0 : i32
    return %arg0, %c0_i32 : i32, i32
  }
}

</mosaic_0001>

<llo_original>
// kernel: tpu_custom_call.1
$region0: #{tpu_custom_call.1}
  #allocation0 [shape = 'u32[]', space=smem, size = 0x4, offset = 0x4, fixed_abs, tag = 'smem constant byte address 0x4 - core index']
  #allocation1 [shape = 'u32[144,128]{1,0:T(1,128)}', space=vmem, size = 0x12000, scoped, tag = 'internal scratch']
  %s0 = inlined_call_operand.hbm [shape: f32[8,32], index: 0, kind: input, shape index: {}]
  %s1 = inlined_call_operand.hbm [shape: f32[32,32], index: 1, kind: input, shape index: {}]
  %s2 = inlined_call_operand.hbm [shape: f32[8,32], index: 2, kind: output, shape index: {}]
  %s3 = sld [smem:[#allocation0]]
  $region26: #{tpu_custom_call.1} parent=0
    _
  %s5 = ssub.s32 1, %s3
  %s6 = scalar_select 0, %s5, %s3
  $region1: #{tpu_custom_call.1} parent=0
    #allocation2 [shape = 'u8[4096]{0}', space=vmem, size = 0x1000, scoped, tag = 'input window, operand 0, single buffered']
    #allocation3 [shape = 's32[1]{0}', space=sflag, size = 0x4, scoped, tag = 'scoped memory for tpu_custom_call.1']
    #allocation4 [shape = 's32[1]{0}', space=sflag, size = 0x4, scoped, tag = 'scoped memory for tpu_custom_call.1']
    #allocation5 [shape = 'u8[16384]{0}', space=vmem, size = 0x4000, scoped, tag = 'input window, operand 1, single buffered']
    #allocation6 [shape = 's32[1]{0}', space=sflag, size = 0x4, scoped, tag = 'scoped memory for tpu_custom_call.1']
    #allocation7 [shape = 'u8[4096]{0}', space=vmem, size = 0x1000, scoped, tag = 'output window, operand 0, single buffered']
    %7 = vsyncpa [#allocation3], 0
    %8 = vsyncpa [#allocation6], 0
    %9 = vsyncpa [#allocation4], 0
    // Predicated region
    $region2: #{tpu_custom_call.1} parent=1 // pred_check
      _
    $region3: #{tpu_custom_call.1} parent=1 // pred_check_branch
      %11 = sbr.rel (0) target = $region5
    $region4: #{tpu_custom_call.1} parent=1 // pred_region
      %s13 = ssub.s32 128, 128
      %14 = vsyncadd [#allocation3], %s13
      %s16 = sshll.u32 [#allocation2], 4
      %s17 = int_to_ptr.vmem [resolvable:$true] %s16
      %19 = dma.hbm_to_vmem [thread:$0]  %s0, 128, %s17, [#allocation3]
    $region5: #{tpu_custom_call.1} parent=1 // pred_fallthru
      _
    // Predicated region
    $region6: #{tpu_custom_call.1} parent=1 // pred_check
      _
    $region7: #{tpu_custom_call.1} parent=1 // pred_check_branch
      %21 = sbr.rel (0) target = $region9
    $region8: #{tpu_custom_call.1} parent=1 // pred_region
      %s23 = ssub.s32 512, 512
      %24 = vsyncadd [#allocation6], %s23
      %s25 = sshll.u32 [#allocation5], 4
      %s26 = int_to_ptr.vmem [resolvable:$true] %s25
      %31 = dma.hbm_to_vmem [thread:$0]  %s1, 512, %s26, [#allocation6], 128, 128, 8
    $region9: #{tpu_custom_call.1} parent=1 // pred_fallthru
      _
    // Predicated region
    $region10: #{tpu_custom_call.1} parent=1 // pred_check
      _
    $region11: #{tpu_custom_call.1} parent=1 // pred_check_branch
      %33 = sbr.rel (0) target = $region13
    $region12: #{tpu_custom_call.1} parent=1 // pred_region
      %34 = dma.done [#allocation3], 128
    $region13: #{tpu_custom_call.1} parent=1 // pred_fallthru
      _
    // Predicated region
    $region14: #{tpu_custom_call.1} parent=1 // pred_check
      _
    $region15: #{tpu_custom_call.1} parent=1 // pred_check_branch
      %36 = sbr.rel (0) target = $region17
    $region16: #{tpu_custom_call.1} parent=1 // pred_region
      %37 = dma.done [#allocation6], 512
    $region17: #{tpu_custom_call.1} parent=1 // pred_fallthru
      _
    %v38 = vld [vmem:[#allocation2] sm:$0xff]
    %v39 = vld [vmem:[#allocation5] sm:$0xff]
    %v40 = vld [vmem:[#allocation5 + $0x8] sm:$0xff]
    %v41 = vld [vmem:[#allocation5 + $0x10] sm:$0xff]
    %v42 = vld [vmem:[#allocation5 + $0x18] sm:$0xff]
    %vm43 = vcmask 261120
    %v45 = vsel %vm43, %v38, 0
    %47 = vmatprep.subr.mxu0 0.0
    %48 = vmatpush1.msra.mxu0 %v39
    %49 = vmatprep.subr.mxu0 0.0
    %50 = vmatpush1.msra.mxu0 %v40
    %51 = vmatprep.subr.mxu0 0.0
    %52 = vmatpush1.msra.mxu0 %v41
    %53 = vmatprep.subr.mxu0 0.0
    %54 = vmatpush1.msra.mxu0 %v42
    %55 = vmatprep.subr.mxu0 0.0
    %56 = vmatpush1.msra.mxu0 0.0
    %57 = vmatprep.subr.mxu0 0.0
    %58 = vmatpush1.msra.mxu0 0.0
    %59 = vmatprep.subr.mxu0 0.0
    %60 = vmatpush1.msra.mxu0 0.0
    %61 = vmatprep.subr.mxu0 0.0
    %62 = vmatpush1.msra.mxu0 0.0
    %63 = vmatprep.subr.mxu0 0.0
    %64 = vmatpush1.msra.mxu0 0.0
    %65 = vmatprep.subr.mxu0 0.0
    %66 = vmatpush1.msra.mxu0 0.0
    %67 = vmatprep.subr.mxu0 0.0
    %68 = vmatpush1.msra.mxu0 0.0
    %69 = vmatprep.subr.mxu0 0.0
    %70 = vmatpush1.msra.mxu0 0.0
    %71 = vmatprep.subr.mxu0 0.0
    %72 = vmatpush1.msra.mxu0 0.0
    %73 = vmatprep.subr.mxu0 0.0
    %74 = vmatpush1.msra.mxu0 0.0
    %75 = vmatprep.subr.mxu0 0.0
    %76 = vmatpush1.msra.mxu0 0.0
    %77 = vmatprep.subr.mxu0 0.0
    %78 = vmatpush1.msra.mxu0 0.0
    %79 = vmatprep.subr.mxu0 0.0
    %80 = vmatpush1.msra.mxu0 0.0
    %81 = vmatprep.subr.mxu0 0.0
    %82 = vmatpush1.msra.mxu0 0.0
    %83 = vmatprep.subr.mxu0 0.0
    %84 = vmatpush1.msra.mxu0 0.0
    %85 = vmatprep.subr.mxu0 0.0
    %86 = vmatpush1.msra.mxu0 0.0
    %87 = vmatprep.subr.mxu0 0.0
    %88 = vmatpush1.msra.mxu0 0.0
    %89 = vmatprep.subr.mxu0 0.0
    %90 = vmatpush1.msra.mxu0 0.0
    %91 = vmatprep.subr.mxu0 0.0
    %92 = vmatpush1.msra.mxu0 0.0
    %93 = vmatprep.subr.mxu0 0.0
    %94 = vmatpush1.msra.mxu0 0.0
    %95 = vmatprep.subr.mxu0 0.0
    %96 = vmatpush1.msra.mxu0 0.0
    %97 = vmatprep.subr.mxu0 0.0
    %98 = vmatpush1.msra.mxu0 0.0
    %99 = vmatprep.subr.mxu0 0.0
    %100 = vmatpush1.msra.mxu0 0.0
    %101 = vmatprep.subr.mxu0 0.0
    %102 = vmatpush1.msra.mxu0 0.0
    %103 = vmatprep.subr.mxu0 0.0
    %104 = vmatpush1.msra.mxu0 0.0
    %105 = vmatprep.subr.mxu0 0.0
    %106 = vmatpush1.msra.mxu0 0.0
    %107 = vmatprep.subr.mxu0 0.0
    %108 = vmatpush1.msra.mxu0 0.0
    %109 = vmatprep.subr.mxu0 0.0
    %110 = vmatpush1.msra.mxu0 0.0
    %111 = vmatprep.mubr.f32.mxu0 0.0
    %112 = vmatmul.mubr.f32.gmra.mrb[0].mxu0 %v45
    %v113 = vpop.f32.mrb[0].mxu0
    %v114 = vadd.f32 0.0, %v113
    %v115 = vpop.f32.mrb[0].mxu0
    %116 = vdwg.mxu0
    %117 = vst.msk [vmem:[#allocation7] sm:$0xff] %vm43, %v114
    // Predicated region
    $region18: #{tpu_custom_call.1} parent=1 // pred_check
      _
    $region19: #{tpu_custom_call.1} parent=1 // pred_check_branch
      %119 = sbr.rel (0) target = $region21
    $region20: #{tpu_custom_call.1} parent=1 // pred_region
      %s121 = ssub.s32 128, 128
      %122 = vsyncadd [#allocation4], %s121
      %s124 = sshll.u32 [#allocation7], 4
      %s125 = int_to_ptr.vmem [resolvable:$true] %s124
      %127 = dma.vmem_to_hbm [thread:$0]  %s125, 128, %s2, [#allocation4]
    $region21: #{tpu_custom_call.1} parent=1 // pred_fallthru
      _
    // Predicated region
    $region22: #{tpu_custom_call.1} parent=1 // pred_check
      _
    $region23: #{tpu_custom_call.1} parent=1 // pred_check_branch
      %129 = sbr.rel (0) target = $region25
    $region24: #{tpu_custom_call.1} parent=1 // pred_region
      %130 = dma.done [#allocation4], 128
    $region25: #{tpu_custom_call.1} parent=1 // pred_fallthru
      _
    %131 = vsyncpa [#allocation3], 1
    %132 = vsyncpa [#allocation6], 1
    %133 = vsyncpa [#allocation4], 1

</llo_original>
